<compile_context>
chip_gen: v7x
topology: tpu7x:2x2x1
jax: 0.10.0
libtpu: 0.0.40
codegen_flags: <defaults>
</compile_context>

<pallas_src>
import jax
import jax.numpy as jnp
from jax.experimental import pallas as pl
from jax.experimental.pallas import tpu as pltpu


_DMA_MIN_CHUNK_BYTES = 1024       # strided-DMA path wants >= 1 KiB contiguous chunks
_DMA_SPLIT_MIN_BYTES = 1 << 20    # split DMA grid in two only for >= 1 MiB outputs (v7x megacore)
_VMEM_SPLIT_MIN_BYTES = 4 << 20   # same idea for the VMEM path


def _roundup(x: int, m: int) -> int:
    return -(-x // m) * m


def _sublane(itemsize: int) -> int:
    # Packed dtypes pack along sublanes: f32 -> 8, bf16/f16 -> 16, int8/fp8 -> 32.
    return max(8, 32 // max(1, int(itemsize)))


def _vmem_budget():
    """Generation-aware (footprint_budget, scoped_vmem_limit) in bytes."""
    try:
        cap = int(pltpu.get_tpu_info().vmem_capacity_bytes)
    except Exception:
        cap = 64 * 1024 * 1024                     # conservative (v7x-sized) default
    budget = max(8 << 20, (cap * 3) // 8)          # ~24 MiB on 64 MiB parts, ~48 MiB on 128 MiB parts
    limit = min(cap - (8 << 20), 2 * budget)       # never request more than physical VMEM
    return budget, limit


# --------------------------------------------------------------------------
# DMA path: HBM -> HBM strided copies, no VMEM staging.
# --------------------------------------------------------------------------
def _make_dma_kernel(n, inner, outer, num_steps, chunk, last_chunk):
    def kernel(*refs):
        in_refs = refs[:n]
        out_ref = refs[n]
        sem = refs[n + 1]

        def issue(start, rows):
            copies = []
            for i, r in enumerate(in_refs):
                cp = pltpu.make_async_copy(
                    r.at[pl.ds(start, rows), :],
                    out_ref.at[pl.ds(start, rows), pl.ds(i * inner, inner)],
                    sem.at[i],
                )
                cp.start()
                copies.append(cp)
            for cp in copies:
                cp.wait()

        if num_steps == 1:
            issue(0, outer)
        elif chunk == last_chunk:
            issue(pl.program_id(0) * chunk, chunk)
        else:
            g = pl.program_id(0)

            @pl.when(g < num_steps - 1)
            def _():
                issue(g * chunk, chunk)

            @pl.when(g == num_steps - 1)
            def _():
                issue((num_steps - 1) * chunk, last_chunk)

    return kernel


def _stack_via_dma(flat, outer, inner, n, dtype, itemsize):
    out_bytes = outer * n * inner * itemsize
    if outer >= 2 and out_bytes >= _DMA_SPLIT_MIN_BYTES:
        num_steps = 2                              # lets v7x shard the copy across both TensorCores
        chunk = -(-outer // 2)
        last_chunk = outer - chunk
    else:
        num_steps, chunk, last_chunk = 1, outer, outer

    return pl.pallas_call(
        _make_dma_kernel(n, inner, outer, num_steps, chunk, last_chunk),
        out_shape=jax.ShapeDtypeStruct((outer, n * inner), dtype),
        grid=(num_steps,),
        in_specs=[pl.BlockSpec(memory_space=pl.ANY) for _ in range(n)],
        out_specs=pl.BlockSpec(memory_space=pl.ANY),
        scratch_shapes=[pltpu.SemaphoreType.DMA((n,))],
        compiler_params=pltpu.CompilerParams(dimension_semantics=("parallel",)),
        cost_estimate=pl.CostEstimate(flops=0, transcendentals=0,
                                      bytes_accessed=2 * out_bytes),
    )(*flat)


# --------------------------------------------------------------------------
# VMEM path (tiny-inner fallback): single pass, emits the final layout.
# --------------------------------------------------------------------------
def _make_vmem_kernel(n, inner):
    def kernel(*refs):
        *in_refs, out_ref = refs
        for i, r in enumerate(in_refs):
            out_ref[:, i * inner:(i + 1) * inner] = r[...]
    return kernel


def _stack_via_vmem(flat, outer, inner, n, dtype, itemsize):
    budget, vmem_limit = _vmem_budget()
    sub = _sublane(itemsize)
    # Lane-padded VMEM bytes per output row, x2 for pipeline double-buffering.
    per_row = 2 * (n * _roundup(inner, 128) + _roundup(n * inner, 128)) * itemsize
    if outer * per_row <= budget:
        t_outer = outer
    else:
        t_outer = (budget // per_row) // sub * sub
        if t_outer < sub:
            return None                            # even the minimum tile would blow VMEM
        t_outer = min(t_outer, outer)
    # Ensure big single-step grids are split so both v7x TensorCores participate.
    if t_outer == outer and outer >= 2 * sub and outer * per_row >= _VMEM_SPLIT_MIN_BYTES:
        t_outer = _roundup(-(-outer // 2), sub)

    grid = (pl.cdiv(outer, t_outer),)
    out_bytes = outer * n * inner * itemsize
    return pl.pallas_call(
        _make_vmem_kernel(n, inner),
        out_shape=jax.ShapeDtypeStruct((outer, n * inner), dtype),
        grid=grid,
        in_specs=[pl.BlockSpec((t_outer, inner), lambda i: (i, 0)) for _ in range(n)],
        out_specs=pl.BlockSpec((t_outer, n * inner), lambda i: (i, 0)),
        compiler_params=pltpu.CompilerParams(
            dimension_semantics=("parallel",),
            vmem_limit_bytes=int(vmem_limit),
        ),
        cost_estimate=pl.CostEstimate(flops=0, transcendentals=0,
                                      bytes_accessed=2 * out_bytes),
    )(*flat)


# --------------------------------------------------------------------------
# Public wrapper: torch.stack(tensors, dim) semantics.
# --------------------------------------------------------------------------
def pallas_stack(tensors, dim):
    tensors = [jnp.asarray(t) for t in tensors]
    if not tensors:
        raise ValueError("stack expects a non-empty sequence of tensors")
    n = len(tensors)
    shape = tuple(tensors[0].shape)
    dtype = tensors[0].dtype
    for t in tensors:
        if tuple(t.shape) != shape:
            raise ValueError("torch.stack requires tensors of identical shape")
        if t.dtype != dtype:
            raise ValueError("torch.stack requires tensors of identical dtype")
    itemsize = jnp.dtype(dtype).itemsize

    out_ndim = len(shape) + 1
    axis = dim if dim >= 0 else dim + out_ndim
    if not 0 <= axis < out_ndim:
        raise ValueError(f"dim {dim} out of range for output rank {out_ndim}")
    out_shape = shape[:axis] + (n,) + shape[axis:]

    total = 1
    for s in shape:
        total *= s
    if total == 0:
        return jnp.zeros(out_shape, dtype)

    inner = 1
    for s in shape[axis:]:
        inner *= s
    outer = total // inner

    flat = [t.reshape(outer, inner) for t in tensors]    # metadata-only (row-major)

    stacked = None
    if axis == 0 or inner * itemsize >= _DMA_MIN_CHUNK_BYTES:
        stacked = _stack_via_dma(flat, outer, inner, n, dtype, itemsize)
    if stacked is None:
        stacked = _stack_via_vmem(flat, outer, inner, n, dtype, itemsize)
    if stacked is None:
        # Pathological (huge n*inner with tiny inner): DMA path is always correct.
        stacked = _stack_via_dma(flat, outer, inner, n, dtype, itemsize)

    return stacked.reshape(out_shape)                    # metadata-only (row-major)


if __name__ == "__main__":
    key = jax.random.PRNGKey(0)
    k0, k1, k2 = jax.random.split(key, 3)
    x0 = jax.random.normal(k0, (2, 4, 16, 16), dtype=jnp.float32)
    x1 = jax.random.normal(k1, (2, 4, 16, 16), dtype=jnp.float32)
    x2 = jax.random.normal(k2, (2, 4, 16, 16), dtype=jnp.float32)
    tensors = [x0, x1, x2]

    for dim in (0, 1, 2, -1):
        out = pallas_stack(tensors, dim)
        jax.block_until_ready(out)
        ref = jnp.stack(tensors, axis=dim)
        assert out.shape == ref.shape, (dim, out.shape, ref.shape)
        assert out.dtype == ref.dtype, (dim, out.dtype, ref.dtype)
        assert bool(jnp.all(out == ref)), f"mismatch at dim={dim}"

    # Ragged shape + packed dtype exercise the small-inner VMEM fallback.
    kb = jax.random.split(jax.random.PRNGKey(1), 3)
    b_tensors = [jax.random.normal(k, (3, 5, 7), dtype=jnp.bfloat16) for k in kb]
    for dim in (0, 2, 3):
        outb = pallas_stack(b_tensors, dim)
        jax.block_until_ready(outb)
        refb = jnp.stack(b_tensors, axis=dim)
        assert outb.shape == refb.shape, (dim, outb.shape, refb.shape)
        assert bool(jnp.all(outb == refb)), f"bf16 mismatch at dim={dim}"

    # Larger inputs exercise the split (2-step "parallel") DMA grid (even and odd outer).
    kc = jax.random.split(jax.random.PRNGKey(2), 2)
    c_tensors = [jax.random.normal(k, (8, 256, 256), dtype=jnp.float32) for k in kc]
    outc = pallas_stack(c_tensors, 1)
    jax.block_until_ready(outc)
    assert bool(jnp.all(outc == jnp.stack(c_tensors, axis=1)))

    kd = jax.random.split(jax.random.PRNGKey(3), 2)
    d_tensors = [jax.random.normal(k, (5, 256, 128), dtype=jnp.float32) for k in kd]
    outd = pallas_stack(d_tensors, 1)
    jax.block_until_ready(outd)
    assert bool(jnp.all(outd == jnp.stack(d_tensors, axis=1)))

    print("KERNEL_OK")
</pallas_src>

<mosaic_0001>
module attributes {stable_mosaic.version = 11 : i64} {
  func.func @kernel(%arg0: i32, %arg1: memref<1x2048xf32, #tpu.memory_space<any>>, %arg2: memref<1x2048xf32, #tpu.memory_space<any>>, %arg3: memref<1x2048xf32, #tpu.memory_space<any>>, %arg4: memref<1x6144xf32, #tpu.memory_space<any>>, %arg5: memref<3x!tpu.dma_semaphore, #tpu.memory_space<semaphore_mem>>) attributes {dimension_semantics = [#tpu.dimension_semantics<parallel>], iteration_bounds = array<i64: 1>, scalar_prefetch = 0 : i64, scratch_operands = 1 : i64, tpu.core_type = #tpu.core_type<tc>, window_params = [{}, {}, {}, {}]} {
    %c0_i32 = arith.constant 0 : i32
    %c0_i32_0 = arith.constant 0 : i32
    %c0_i32_1 = arith.constant 0 : i32
    %0 = tpu.memref_slice %arg1[%c0_i32_0, %c0_i32_1] : memref<1x2048xf32, #tpu.memory_space<any>> -> memref<1x2048xf32, #tpu.memory_space<any>>
    %c0_i32_2 = arith.constant 0 : i32
    %c0_i32_3 = arith.constant 0 : i32
    %1 = tpu.memref_slice %arg4[%c0_i32_2, %c0_i32_3] : memref<1x6144xf32, #tpu.memory_space<any>> -> memref<1x2048xf32, #tpu.memory_space<any>>
    %2 = tpu.memref_slice %arg5[%c0_i32] : memref<3x!tpu.dma_semaphore, #tpu.memory_space<semaphore_mem>> -> memref<1x!tpu.dma_semaphore, #tpu.memory_space<semaphore_mem>>
    %3 = tpu.memref_squeeze %2 : memref<1x!tpu.dma_semaphore, #tpu.memory_space<semaphore_mem>> -> memref<!tpu.dma_semaphore, #tpu.memory_space<semaphore_mem>>
    tpu.enqueue_dma source(%0 : memref<1x2048xf32, #tpu.memory_space<any>>) target(%1 : memref<1x2048xf32, #tpu.memory_space<any>>) target_semaphore(%3 : memref<!tpu.dma_semaphore, #tpu.memory_space<semaphore_mem>>)
    %c1_i32 = arith.constant 1 : i32
    %c0_i32_4 = arith.constant 0 : i32
    %c0_i32_5 = arith.constant 0 : i32
    %4 = tpu.memref_slice %arg2[%c0_i32_4, %c0_i32_5] : memref<1x2048xf32, #tpu.memory_space<any>> -> memref<1x2048xf32, #tpu.memory_space<any>>
    %c0_i32_6 = arith.constant 0 : i32
    %c2048_i32 = arith.constant 2048 : i32
    %5 = tpu.memref_slice %arg4[%c0_i32_6, %c2048_i32] : memref<1x6144xf32, #tpu.memory_space<any>> -> memref<1x2048xf32, #tpu.memory_space<any>>
    %6 = tpu.memref_slice %arg5[%c1_i32] : memref<3x!tpu.dma_semaphore, #tpu.memory_space<semaphore_mem>> -> memref<1x!tpu.dma_semaphore, #tpu.memory_space<semaphore_mem>>
    %7 = tpu.memref_squeeze %6 : memref<1x!tpu.dma_semaphore, #tpu.memory_space<semaphore_mem>> -> memref<!tpu.dma_semaphore, #tpu.memory_space<semaphore_mem>>
    tpu.enqueue_dma source(%4 : memref<1x2048xf32, #tpu.memory_space<any>>) target(%5 : memref<1x2048xf32, #tpu.memory_space<any>>) target_semaphore(%7 : memref<!tpu.dma_semaphore, #tpu.memory_space<semaphore_mem>>)
    %c2_i32 = arith.constant 2 : i32
    %c0_i32_7 = arith.constant 0 : i32
    %c0_i32_8 = arith.constant 0 : i32
    %8 = tpu.memref_slice %arg3[%c0_i32_7, %c0_i32_8] : memref<1x2048xf32, #tpu.memory_space<any>> -> memref<1x2048xf32, #tpu.memory_space<any>>
    %c0_i32_9 = arith.constant 0 : i32
    %c4096_i32 = arith.constant 4096 : i32
    %9 = tpu.memref_slice %arg4[%c0_i32_9, %c4096_i32] : memref<1x6144xf32, #tpu.memory_space<any>> -> memref<1x2048xf32, #tpu.memory_space<any>>
    %10 = tpu.memref_slice %arg5[%c2_i32] : memref<3x!tpu.dma_semaphore, #tpu.memory_space<semaphore_mem>> -> memref<1x!tpu.dma_semaphore, #tpu.memory_space<semaphore_mem>>
    %11 = tpu.memref_squeeze %10 : memref<1x!tpu.dma_semaphore, #tpu.memory_space<semaphore_mem>> -> memref<!tpu.dma_semaphore, #tpu.memory_space<semaphore_mem>>
    tpu.enqueue_dma source(%8 : memref<1x2048xf32, #tpu.memory_space<any>>) target(%9 : memref<1x2048xf32, #tpu.memory_space<any>>) target_semaphore(%11 : memref<!tpu.dma_semaphore, #tpu.memory_space<semaphore_mem>>)
    %c0_i32_10 = arith.constant 0 : i32
    %c0_i32_11 = arith.constant 0 : i32
    %c0_i32_12 = arith.constant 0 : i32
    %12 = tpu.memref_slice %arg1[%c0_i32_11, %c0_i32_12] : memref<1x2048xf32, #tpu.memory_space<any>> -> memref<1x2048xf32, #tpu.memory_space<any>>
    %c0_i32_13 = arith.constant 0 : i32
    %c0_i32_14 = arith.constant 0 : i32
    %13 = tpu.memref_slice %arg4[%c0_i32_13, %c0_i32_14] : memref<1x6144xf32, #tpu.memory_space<any>> -> memref<1x2048xf32, #tpu.memory_space<any>>
    %14 = tpu.memref_slice %arg5[%c0_i32_10] : memref<3x!tpu.dma_semaphore, #tpu.memory_space<semaphore_mem>> -> memref<1x!tpu.dma_semaphore, #tpu.memory_space<semaphore_mem>>
    %15 = tpu.memref_squeeze %14 : memref<1x!tpu.dma_semaphore, #tpu.memory_space<semaphore_mem>> -> memref<!tpu.dma_semaphore, #tpu.memory_space<semaphore_mem>>
    tpu.wait_dma2 semaphore(%15 : memref<!tpu.dma_semaphore, #tpu.memory_space<semaphore_mem>>) src(%12 : memref<1x2048xf32, #tpu.memory_space<any>>) dst(%13 : memref<1x2048xf32, #tpu.memory_space<any>>)
    %c1_i32_15 = arith.constant 1 : i32
    %c0_i32_16 = arith.constant 0 : i32
    %c0_i32_17 = arith.constant 0 : i32
    %16 = tpu.memref_slice %arg2[%c0_i32_16, %c0_i32_17] : memref<1x2048xf32, #tpu.memory_space<any>> -> memref<1x2048xf32, #tpu.memory_space<any>>
    %c0_i32_18 = arith.constant 0 : i32
    %c2048_i32_19 = arith.constant 2048 : i32
    %17 = tpu.memref_slice %arg4[%c0_i32_18, %c2048_i32_19] : memref<1x6144xf32, #tpu.memory_space<any>> -> memref<1x2048xf32, #tpu.memory_space<any>>
    %18 = tpu.memref_slice %arg5[%c1_i32_15] : memref<3x!tpu.dma_semaphore, #tpu.memory_space<semaphore_mem>> -> memref<1x!tpu.dma_semaphore, #tpu.memory_space<semaphore_mem>>
    %19 = tpu.memref_squeeze %18 : memref<1x!tpu.dma_semaphore, #tpu.memory_space<semaphore_mem>> -> memref<!tpu.dma_semaphore, #tpu.memory_space<semaphore_mem>>
    tpu.wait_dma2 semaphore(%19 : memref<!tpu.dma_semaphore, #tpu.memory_space<semaphore_mem>>) src(%16 : memref<1x2048xf32, #tpu.memory_space<any>>) dst(%17 : memref<1x2048xf32, #tpu.memory_space<any>>)
    %c2_i32_20 = arith.constant 2 : i32
    %c0_i32_21 = arith.constant 0 : i32
    %c0_i32_22 = arith.constant 0 : i32
    %20 = tpu.memref_slice %arg3[%c0_i32_21, %c0_i32_22] : memref<1x2048xf32, #tpu.memory_space<any>> -> memref<1x2048xf32, #tpu.memory_space<any>>
    %c0_i32_23 = arith.constant 0 : i32
    %c4096_i32_24 = arith.constant 4096 : i32
    %21 = tpu.memref_slice %arg4[%c0_i32_23, %c4096_i32_24] : memref<1x6144xf32, #tpu.memory_space<any>> -> memref<1x2048xf32, #tpu.memory_space<any>>
    %22 = tpu.memref_slice %arg5[%c2_i32_20] : memref<3x!tpu.dma_semaphore, #tpu.memory_space<semaphore_mem>> -> memref<1x!tpu.dma_semaphore, #tpu.memory_space<semaphore_mem>>
    %23 = tpu.memref_squeeze %22 : memref<1x!tpu.dma_semaphore, #tpu.memory_space<semaphore_mem>> -> memref<!tpu.dma_semaphore, #tpu.memory_space<semaphore_mem>>
    tpu.wait_dma2 semaphore(%23 : memref<!tpu.dma_semaphore, #tpu.memory_space<semaphore_mem>>) src(%20 : memref<1x2048xf32, #tpu.memory_space<any>>) dst(%21 : memref<1x2048xf32, #tpu.memory_space<any>>)
    return
  }
}

</mosaic_0001>

<llo_original>
// kernel: tpu_custom_call.1
$region0: #{tpu_custom_call.1}
  #allocation0 [shape = 'u32[]', space=smem, size = 0x4, offset = 0x4, fixed_abs, tag = 'smem constant byte address 0x4 - core index']
  #allocation1 [shape = 'u32[144,128]{1,0:T(1,128)}', space=vmem, size = 0x12000, scoped, tag = 'internal scratch']
  #allocation2 [shape = 's32[3]{0}', space=sflag, size = 0xc, scoped, tag = 'scratch operand']
  #allocation3 [shape = 's32[]', space=sflag, size = 0x4, offset = 0, fixed_abs, tag = 'sflag constant byte address 0x0 - dummy sync flag']
  #allocation4 [shape = 'u32[0]{0}', space=smem, size = 0, offset = 0, fixed_abs, tag = 'smem constant byte address 0x0 - null']
  #allocation5 [shape = 's32[]', space=sflag, size = 0x4, offset = 0, fixed_abs, tag = 'sflag constant byte address 0x0 - dummy sync flag']
  #allocation6 [shape = 'u32[0]{0}', space=smem, size = 0, offset = 0, fixed_abs, tag = 'smem constant byte address 0x0 - null']
  #allocation7 [shape = 's32[]', space=sflag, size = 0x4, offset = 0, fixed_abs, tag = 'sflag constant byte address 0x0 - dummy sync flag']
  #allocation8 [shape = 'u32[0]{0}', space=smem, size = 0, offset = 0, fixed_abs, tag = 'smem constant byte address 0x0 - null']
  %s0 = inlined_call_operand.hbm [shape: f32[1,2048], index: 0, kind: input, shape index: {}]
  %s1 = inlined_call_operand.hbm [shape: f32[1,2048], index: 1, kind: input, shape index: {}]
  %s2 = inlined_call_operand.hbm [shape: f32[1,2048], index: 2, kind: input, shape index: {}]
  %s3 = inlined_call_operand.hbm [shape: f32[1,6144], index: 3, kind: output, shape index: {}]
  %s4 = sld [smem:[#allocation0]]
  $region2: #{tpu_custom_call.1} parent=0
    _
  %s6 = ssub.s32 1, %s4
  %s7 = scalar_select 0, %s6, %s4
  %s9 = sshll.u32 1, 14
  %s10 = sxor.u32 4294967295, %s9
  %s13 = sshll.u32 3, 24
  %s14 = sxor.u32 4294967295, %s13
  %s15 = sand.u32 0, %s14
  %s17 = sor.u32 %s15, 0
  %20 = dma.general %s0, 256, %s3, [#allocation2], [#allocation3], [#allocation4], %s17, 0
  %s21 = scalar_lea.hbm %s3, 256
  %s22 = scalar_lea.sflag [#allocation2], 1
  %s24 = sshll.u32 1, 14
  %s25 = sxor.u32 4294967295, %s24
  %s28 = sshll.u32 3, 24
  %s29 = sxor.u32 4294967295, %s28
  %s30 = sand.u32 0, %s29
  %s32 = sor.u32 %s30, 0
  %35 = dma.general %s1, 256, %s21, %s22, [#allocation5], [#allocation6], %s32, 0
  %s36 = scalar_lea.hbm %s3, 512
  %s37 = scalar_lea.sflag [#allocation2], 2
  %s39 = sshll.u32 1, 14
  %s40 = sxor.u32 4294967295, %s39
  %s43 = sshll.u32 3, 24
  %s44 = sxor.u32 4294967295, %s43
  %s45 = sand.u32 0, %s44
  %s47 = sor.u32 %s45, 0
  %50 = dma.general %s2, 256, %s36, %s37, [#allocation7], [#allocation8], %s47, 0
  %s51 = smul.u32 1, 16
  %s52 = sshll.u32 %s51, 4
  %53 = dma.done [#allocation2], %s52
  %s54 = sshll.u32 %s51, 4
  %55 = dma.done %s22, %s54
  %s56 = sshll.u32 %s51, 4
  %57 = dma.done %s37, %s56
  %58 = vsyncmov [#allocation2]
  %s59 = vpop.sfrf %58
  %p60 = scmp.eq.s32.totalorder %s59, 0
  %p61 = pneg %p60
  %63 = shalt.err (%p61)
  %s64 = scalar_lea.sflag [#allocation2], 1
  %65 = vsyncmov %s64
  %s66 = vpop.sfrf %65
  %p67 = scmp.eq.s32.totalorder %s66, 0
  %p68 = pneg %p67
  %70 = shalt.err (%p68)
  %s71 = scalar_lea.sflag [#allocation2], 2
  %72 = vsyncmov %s71
  %s73 = vpop.sfrf %72
  %p74 = scmp.eq.s32.totalorder %s73, 0
  %p75 = pneg %p74
  %77 = shalt.err (%p75)

</llo_original>
